<compile_context>
chip_gen: v7x
topology: tpu7x:2x2x1
jax: 0.10.0
libtpu: 0.0.40
codegen_flags: <defaults>
</compile_context>

<pallas_src>
import functools

import jax
import jax.numpy as jnp
import numpy as np
from jax import lax
from jax.experimental import pallas as pl
from jax.experimental.pallas import tpu as pltpu


def _nonlocal_flash_kernel(xq_ref, k_ref, v_ref, wq_ref, bq_ref, o_ref,
                           q_sc, m_sc, l_sc, acc_sc, *, compute_dtype):
    ki = pl.program_id(2)

    # ---- init (first key step for this (batch, query-tile)) ----------------
    @pl.when(ki == 0)
    def _init():
        xq = xq_ref[0]                                              # (C, TQ)
        # Query projection (reuses the residual x tile); bias added in f32,
        # result kept resident in compute-dtype scratch for all key steps.
        q = (jnp.dot(wq_ref[...], xq.astype(compute_dtype),
                     preferred_element_type=jnp.float32)
             + bq_ref[...])                                         # (Hc, TQ) f32
        q_sc[...] = q.astype(compute_dtype)
        m_sc[...] = jnp.full(m_sc.shape, -jnp.inf, dtype=m_sc.dtype)
        l_sc[...] = jnp.zeros_like(l_sc)
        acc_sc[...] = jnp.zeros_like(acc_sc)

    # ---- pre-projected key/value tiles (projection hoisted to wrapper) -----
    k = k_ref[0].astype(compute_dtype)                              # (Hc, TK)
    v = v_ref[0].astype(compute_dtype)                              # (C,  TK)

    # scores s[j, i] = sum_h k[h, j] * q[h, i]   (== energy[i, j])
    s = lax.dot_general(k, q_sc[...],
                        dimension_numbers=(((0,), (0,)), ((), ())),
                        preferred_element_type=jnp.float32)         # (TK, TQ) f32

    # ---- online softmax over the key axis (axis 0) --------------------------
    m_prev = m_sc[...]                                              # (1, TQ)
    m_new = jnp.maximum(m_prev, jnp.max(s, axis=0, keepdims=True))
    alpha = jnp.exp(m_prev - m_new)                                 # (1, TQ) f32
    # Big exp taken on the compute-dtype argument (bf16 EUP on v6e/v7x);
    # p feeds the bf16 PV matmul directly, accumulation stays f32.
    p = jnp.exp((s - m_new).astype(compute_dtype))                  # (TK, TQ)
    l_sc[...] = alpha * l_sc[...] + jnp.sum(p.astype(jnp.float32),
                                            axis=0, keepdims=True)
    acc_sc[...] = alpha * acc_sc[...] + jnp.dot(
        v, p, preferred_element_type=jnp.float32)                   # (C, TQ) f32
    m_sc[...] = m_new

    # ---- finalize: normalize (exact), add residual, store -------------------
    @pl.when(ki == pl.num_programs(2) - 1)
    def _finalize():
        inv_l = pl.reciprocal(l_sc[...], approx=False)              # exact 1/l
        out = xq_ref[0].astype(jnp.float32) + acc_sc[...] * inv_l   # (C, TQ)
        o_ref[0] = out.astype(o_ref.dtype)


def _vmem_capacity_bytes():
    """Generation-aware VMEM budget (v7x: 64 MiB/TC; v5e/v6e: 128 MiB)."""
    try:
        return int(pltpu.get_tpu_info().vmem_capacity_bytes)
    except Exception:
        return 64 << 20   # conservative default (v7x-sized)


def _pick_tiles(n, tq, tk, vmem_bytes):
    big_vmem = vmem_bytes > (96 << 20)          # v5e / v6e class parts
    if tq is None:
        # After the K/V hoist + bf16 streaming, larger query tiles keep the
        # kernel MXU-bound on 128 MiB parts; cap at 512 on v7x-sized VMEM
        # (also keeps B*(N/TQ) >= 2 for the two TensorCores per v7x chip).
        tq_cap = 1024 if big_vmem else 512
        tq = next((t for t in (1024, 512, 256, 128)
                   if t <= tq_cap and n % t == 0), n)
    if tk is None:
        # Larger key tiles halve the per-step rescale of the f32 accumulator.
        tk_cap = 1024 if big_vmem else 512
        tk = next((t for t in (1024, 512, 256, 128)
                   if t <= tk_cap and n % t == 0), n)
    return tq, tk


@functools.partial(jax.jit, static_argnames=("tq", "tk", "compute_dtype"))
def nonlocal2d_pallas(x_nchw, wq, bq, wk, bk, wv, bv, *, tq=None, tk=None,
                      compute_dtype=jnp.bfloat16):
    """x_nchw: (B, C, H, W).  Conv weights in PyTorch (out, in, 1, 1) layout."""
    B, C, H, W = x_nchw.shape
    N = H * W
    Hc = wq.shape[0]

    device_vmem = _vmem_capacity_bytes()
    tq, tk = _pick_tiles(N, tq, tk, device_vmem)
    assert N % tq == 0 and N % tk == 0

    # Layout glue: NCHW -> (B, C, N) is a free reshape (no transpose).
    x_bcn = x_nchw.reshape(B, C, N)

    # Query weights stay in-kernel (projection reuses the residual x tile).
    wq_m = wq.reshape(Hc, C).astype(compute_dtype)
    bq_m = bq.reshape(Hc, 1).astype(jnp.float32)

    # K/V 1x1 projections hoisted out of the key loop: one plain XLA GEMM
    # each (done once, instead of once per (b, qi, ki) grid step).  Stored in
    # the compute dtype so the kernel streams half the HBM bytes.
    k_bhn = (jnp.einsum('hc,bcn->bhn', wk.reshape(Hc, C), x_bcn)
             + bk.reshape(1, Hc, 1)).astype(compute_dtype)
    v_bcn = (jnp.einsum('oc,bcn->bon', wv.reshape(C, C), x_bcn)
             + bv.reshape(1, C, 1)).astype(compute_dtype)

    grid = (B, N // tq, N // tk)
    kernel = functools.partial(_nonlocal_flash_kernel,
                               compute_dtype=compute_dtype)

    csize = jnp.dtype(compute_dtype).itemsize
    xsize = jnp.dtype(x_nchw.dtype).itemsize

    # VMEM need: double-buffered input/output tiles + scratch + s/p temps.
    vmem_need = (
        2 * C * tq * xsize                  # x query tiles
        + 2 * Hc * tk * csize               # k tiles
        + 2 * C * tk * csize                # v tiles
        + 2 * (Hc * C * csize + Hc * 4)     # wq / bq broadcasts
        + 2 * C * tq * xsize                # output tiles
        + Hc * tq * csize                   # q scratch
        + 2 * tq * 4                        # running max / sum
        + C * tq * 4                        # accumulator
        + tk * tq * (4 + csize)             # s (f32) + p (compute) temporaries
    )
    vmem_limit = int(min(max(2 * vmem_need + (8 << 20), 32 << 20),
                         int(0.9 * device_vmem)))

    n_q_tiles = N // tq
    cost = pl.CostEstimate(
        flops=2 * B * N * Hc * C + 2 * B * N * N * (Hc + C),
        transcendentals=B * N * N,
        bytes_accessed=(2 * B * C * N * xsize                       # x + out
                        + B * n_q_tiles * (Hc + C) * N * csize      # k/v restream
                        + Hc * C * csize + Hc * 4),                 # weights
    )

    out_bcn = pl.pallas_call(
        kernel,
        out_shape=jax.ShapeDtypeStruct((B, C, N), x_nchw.dtype),
        grid_spec=pltpu.PrefetchScalarGridSpec(
            num_scalar_prefetch=0,
            grid=grid,
            in_specs=[
                pl.BlockSpec((1, C, tq), lambda b, qi, ki: (b, 0, qi)),   # x (query/residual)
                pl.BlockSpec((1, Hc, tk), lambda b, qi, ki: (b, 0, ki)),  # key tile
                pl.BlockSpec((1, C, tk), lambda b, qi, ki: (b, 0, ki)),   # value tile
                pl.BlockSpec((Hc, C), lambda b, qi, ki: (0, 0)),          # Wq
                pl.BlockSpec((Hc, 1), lambda b, qi, ki: (0, 0)),          # bq
            ],
            out_specs=pl.BlockSpec((1, C, tq), lambda b, qi, ki: (b, 0, qi)),
            scratch_shapes=[
                pltpu.VMEM((Hc, tq), compute_dtype),  # q tile (resident over ki)
                pltpu.VMEM((1, tq), jnp.float32),     # running max
                pltpu.VMEM((1, tq), jnp.float32),     # running sum
                pltpu.VMEM((C, tq), jnp.float32),     # output accumulator
            ],
        ),
        compiler_params=pltpu.CompilerParams(
            dimension_semantics=("parallel", "parallel", "arbitrary"),
            vmem_limit_bytes=vmem_limit,
        ),
        cost_estimate=cost,
    )(x_bcn, k_bhn, v_bcn, wq_m, bq_m)

    # (B, C, N) -> NCHW is again a free reshape.
    return out_bcn.reshape(B, C, H, W)


def _reference_np(x, wq, bq, wk, bk, wv, bv):
    """Exact float64 NumPy replica of the PyTorch forward, for verification."""
    x64 = np.asarray(x, np.float64)
    B, C, H, W = x64.shape
    N = H * W
    Hc = np.asarray(wq).shape[0]
    xf = x64.reshape(B, C, N)
    wq2 = np.asarray(wq, np.float64).reshape(Hc, C)
    wk2 = np.asarray(wk, np.float64).reshape(Hc, C)
    wv2 = np.asarray(wv, np.float64).reshape(C, C)
    q = np.einsum('hc,bcn->bhn', wq2, xf) + np.asarray(bq, np.float64)[None, :, None]
    k = np.einsum('hc,bcn->bhn', wk2, xf) + np.asarray(bk, np.float64)[None, :, None]
    v = np.einsum('oc,bcn->bon', wv2, xf) + np.asarray(bv, np.float64)[None, :, None]
    energy = np.einsum('bhn,bhm->bnm', q, k)          # (B, Nq, Nk)
    energy = energy - energy.max(axis=-1, keepdims=True)
    w = np.exp(energy)
    w = w / w.sum(axis=-1, keepdims=True)
    out = xf + np.einsum('bcn,bmn->bcm', v, w)
    return out.reshape(B, C, H, W)


if __name__ == "__main__":
    B, C, H, W = 2, 4, 16, 16
    hidden = 32

    key = jax.random.PRNGKey(0)
    kx, kq, kbq, kk, kbk, kwv, kbv = jax.random.split(key, 7)

    x = jax.random.normal(kx, (B, C, H, W), dtype=jnp.float32)

    bound = float(1.0 / np.sqrt(C))
    wq = jax.random.uniform(kq, (hidden, C, 1, 1), jnp.float32, -bound, bound)
    bq = jax.random.uniform(kbq, (hidden,), jnp.float32, -bound, bound)
    wk = jax.random.uniform(kk, (hidden, C, 1, 1), jnp.float32, -bound, bound)
    bk = jax.random.uniform(kbk, (hidden,), jnp.float32, -bound, bound)
    wv = jax.random.uniform(kwv, (C, C, 1, 1), jnp.float32, -bound, bound)
    bv = jax.random.uniform(kbv, (C,), jnp.float32, -bound, bound)

    ref = _reference_np(x, wq, bq, wk, bk, wv, bv)

    # Case 1: non-zero value conv, tq=tk=128 at N=256 -> grid (2, 2, 2), so the
    # online softmax runs over multiple key steps.  The kernel uses bf16 MXU
    # operands with f32 accumulation, so compare against the exact float64
    # reference at bf16-level tolerance.
    out = jax.block_until_ready(
        nonlocal2d_pallas(x, wq, bq, wk, bk, wv, bv, tq=128, tk=128))
    np.testing.assert_allclose(np.asarray(out, np.float64), ref,
                               rtol=5e-2, atol=5e-2)

    # Case 2: module-default init (value conv zeroed per reset_parameters()):
    # the attention branch is exactly zero, so output must equal x exactly.
    wv0 = jnp.zeros((C, C, 1, 1), jnp.float32)
    bv0 = jnp.zeros((C,), jnp.float32)
    out0 = jax.block_until_ready(
        nonlocal2d_pallas(x, wq, bq, wk, bk, wv0, bv0, tq=128, tk=128))
    np.testing.assert_allclose(np.asarray(out0), np.asarray(x),
                               rtol=1e-6, atol=1e-6)

    # Case 3: auto-picked tiles (single key step at N=256) exercises the
    # init + finalize-in-one-step path and the generation-aware tile picker.
    out1 = jax.block_until_ready(nonlocal2d_pallas(x, wq, bq, wk, bk, wv, bv))
    np.testing.assert_allclose(np.asarray(out1, np.float64), ref,
                               rtol=5e-2, atol=5e-2)

    print("KERNEL_OK")
</pallas_src>

<mosaic_0001>
module attributes {stable_mosaic.version = 11 : i64} {
  func.func @_nonlocal_flash_kernel(%arg0: i32, %arg1: i32, %arg2: i32, %arg3: memref<1x4x128xf32, #tpu.memory_space<vmem>>, %arg4: memref<1x32x128xbf16, #tpu.memory_space<vmem>>, %arg5: memref<1x4x128xbf16, #tpu.memory_space<vmem>>, %arg6: memref<32x4xbf16, #tpu.memory_space<vmem>>, %arg7: memref<32x1xf32, #tpu.memory_space<vmem>>, %arg8: memref<1x4x128xf32, #tpu.memory_space<vmem>>, %arg9: memref<32x128xbf16, #tpu.memory_space<vmem>>, %arg10: memref<1x128xf32, #tpu.memory_space<vmem>>, %arg11: memref<1x128xf32, #tpu.memory_space<vmem>>, %arg12: memref<4x128xf32, #tpu.memory_space<vmem>>) attributes {dimension_semantics = [#tpu.dimension_semantics<parallel>, #tpu.dimension_semantics<parallel>, #tpu.dimension_semantics<arbitrary>], iteration_bounds = array<i64: 2, 2, 2>, scalar_prefetch = 0 : i64, scratch_operands = 4 : i64, tpu.core_type = #tpu.core_type<tc>, window_params = [{transform_indices = @transform_0, window_bounds = array<i64: 1, 4, 128>}, {transform_indices = @transform_1, window_bounds = array<i64: 1, 32, 128>}, {transform_indices = @transform_2, window_bounds = array<i64: 1, 4, 128>}, {pipeline_mode = #tpu.pipeline_mode<synchronous>, transform_indices = @transform_3, window_bounds = array<i64: 32, 4>}, {pipeline_mode = #tpu.pipeline_mode<synchronous>, transform_indices = @transform_4, window_bounds = array<i64: 32, 1>}, {transform_indices = @transform_5, window_bounds = array<i64: 1, 4, 128>}]} {
    %c0_i32 = arith.constant 0 : i32
    %0 = arith.cmpi eq, %arg2, %c0_i32 : i32
    %1 = arith.extui %0 : i1 to i32
    %c0_i32_0 = arith.constant 0 : i32
    %2 = arith.cmpi ne, %1, %c0_i32_0 : i32
    scf.if %2 {
      %c0_24 = arith.constant 0 : index
      %c0_25 = arith.constant 0 : index
      %c0_26 = arith.constant 0 : index
      %36 = vector.load %arg3[%c0_24, %c0_25, %c0_26] : memref<1x4x128xf32, #tpu.memory_space<vmem>>, vector<1x4x128xf32>
      %37 = vector.shape_cast %36 : vector<1x4x128xf32> to vector<4x128xf32>
      %c0_27 = arith.constant 0 : index
      %c0_28 = arith.constant 0 : index
      %38 = vector.load %arg6[%c0_27, %c0_28] : memref<32x4xbf16, #tpu.memory_space<vmem>>, vector<32x4xbf16>
      %39 = arith.truncf %37 : vector<4x128xf32> to vector<4x128xbf16>
      %cst_29 = arith.constant dense<0.000000e+00> : vector<32x128xf32>
      %40 = tpu.matmul %38, %39, %cst_29 {dimension_numbers = #tpu.dot_dimension_numbers<[1], [0], [0], [1], [0, 0, 1, 1], [], []>} : vector<32x4xbf16>, vector<4x128xbf16>, vector<32x128xf32> -> vector<32x128xf32>
      %c0_30 = arith.constant 0 : index
      %c0_31 = arith.constant 0 : index
      %41 = vector.load %arg7[%c0_30, %c0_31] : memref<32x1xf32, #tpu.memory_space<vmem>>, vector<32x1xf32>
      %42 = vector.broadcast %41 : vector<32x1xf32> to vector<32x128xf32>
      %43 = arith.addf %40, %42 : vector<32x128xf32>
      %44 = arith.truncf %43 : vector<32x128xf32> to vector<32x128xbf16>
      %c0_32 = arith.constant 0 : index
      %c0_33 = arith.constant 0 : index
      %45 = vector.load %arg9[%c0_32, %c0_33] : memref<32x128xbf16, #tpu.memory_space<vmem>>, vector<32x128xbf16>
      tpu.vector_store %arg9[%c0_32, %c0_33], %44 {strides = array<i32>} : memref<32x128xbf16, #tpu.memory_space<vmem>>, vector<32x128xbf16>,
      %cst_34 = arith.constant 0xFF800000 : f32
      %46 = vector.broadcast %cst_34 : f32 to vector<1x128xf32>
      %c0_35 = arith.constant 0 : index
      %c0_36 = arith.constant 0 : index
      %47 = vector.load %arg10[%c0_35, %c0_36] : memref<1x128xf32, #tpu.memory_space<vmem>>, vector<1x128xf32>
      tpu.vector_store %arg10[%c0_35, %c0_36], %46 {strides = array<i32>} : memref<1x128xf32, #tpu.memory_space<vmem>>, vector<1x128xf32>,
      %cst_37 = arith.constant 0.000000e+00 : f32
      %48 = vector.broadcast %cst_37 : f32 to vector<1x128xf32>
      %c0_38 = arith.constant 0 : index
      %c0_39 = arith.constant 0 : index
      %49 = vector.load %arg11[%c0_38, %c0_39] : memref<1x128xf32, #tpu.memory_space<vmem>>, vector<1x128xf32>
      tpu.vector_store %arg11[%c0_38, %c0_39], %48 {strides = array<i32>} : memref<1x128xf32, #tpu.memory_space<vmem>>, vector<1x128xf32>,
      %cst_40 = arith.constant 0.000000e+00 : f32
      %50 = vector.broadcast %cst_40 : f32 to vector<4x128xf32>
      %c0_41 = arith.constant 0 : index
      %c0_42 = arith.constant 0 : index
      %51 = vector.load %arg12[%c0_41, %c0_42] : memref<4x128xf32, #tpu.memory_space<vmem>>, vector<4x128xf32>
      tpu.vector_store %arg12[%c0_41, %c0_42], %50 {strides = array<i32>} : memref<4x128xf32, #tpu.memory_space<vmem>>, vector<4x128xf32>,
    } else {
    }
    %c0 = arith.constant 0 : index
    %c0_1 = arith.constant 0 : index
    %c0_2 = arith.constant 0 : index
    %3 = vector.load %arg4[%c0, %c0_1, %c0_2] : memref<1x32x128xbf16, #tpu.memory_space<vmem>>, vector<1x32x128xbf16>
    %4 = vector.shape_cast %3 : vector<1x32x128xbf16> to vector<32x128xbf16>
    %c0_3 = arith.constant 0 : index
    %c0_4 = arith.constant 0 : index
    %c0_5 = arith.constant 0 : index
    %5 = vector.load %arg5[%c0_3, %c0_4, %c0_5] : memref<1x4x128xbf16, #tpu.memory_space<vmem>>, vector<1x4x128xbf16>
    %6 = vector.shape_cast %5 : vector<1x4x128xbf16> to vector<4x128xbf16>
    %c0_6 = arith.constant 0 : index
    %c0_7 = arith.constant 0 : index
    %7 = vector.load %arg9[%c0_6, %c0_7] : memref<32x128xbf16, #tpu.memory_space<vmem>>, vector<32x128xbf16>
    %cst = arith.constant dense<0.000000e+00> : vector<128x128xf32>
    %8 = tpu.matmul %4, %7, %cst {dimension_numbers = #tpu.dot_dimension_numbers<[0], [0], [1], [1], [0, 1, 1, 1], [], []>} : vector<32x128xbf16>, vector<32x128xbf16>, vector<128x128xf32> -> vector<128x128xf32>
    %c0_8 = arith.constant 0 : index
    %c0_9 = arith.constant 0 : index
    %9 = vector.load %arg10[%c0_8, %c0_9] : memref<1x128xf32, #tpu.memory_space<vmem>>, vector<1x128xf32>
    %cst_10 = arith.constant dense<0xFF800000> : vector<128xf32>
    %10 = vector.multi_reduction <maximumf>, %8, %cst_10 [0] : vector<128x128xf32> to vector<128xf32>
    %11 = vector.shape_cast %10 : vector<128xf32> to vector<1x128xf32>
    %12 = arith.maximumf %9, %11 : vector<1x128xf32>
    %13 = arith.subf %9, %12 : vector<1x128xf32>
    %14 = math.exp %13 : vector<1x128xf32>
    %15 = vector.broadcast %12 : vector<1x128xf32> to vector<128x128xf32>
    %16 = arith.subf %8, %15 : vector<128x128xf32>
    %17 = arith.truncf %16 : vector<128x128xf32> to vector<128x128xbf16>
    %18 = math.exp %17 : vector<128x128xbf16>
    %c0_11 = arith.constant 0 : index
    %c0_12 = arith.constant 0 : index
    %19 = vector.load %arg11[%c0_11, %c0_12] : memref<1x128xf32, #tpu.memory_space<vmem>>, vector<1x128xf32>
    %20 = arith.mulf %14, %19 : vector<1x128xf32>
    %21 = arith.extf %18 : vector<128x128xbf16> to vector<128x128xf32>
    %cst_13 = arith.constant dense<0.000000e+00> : vector<128xf32>
    %22 = vector.multi_reduction <add>, %21, %cst_13 [0] : vector<128x128xf32> to vector<128xf32>
    %23 = vector.shape_cast %22 : vector<128xf32> to vector<1x128xf32>
    %24 = arith.addf %20, %23 : vector<1x128xf32>
    %c0_14 = arith.constant 0 : index
    %c0_15 = arith.constant 0 : index
    %25 = vector.load %arg11[%c0_14, %c0_15] : memref<1x128xf32, #tpu.memory_space<vmem>>, vector<1x128xf32>
    tpu.vector_store %arg11[%c0_14, %c0_15], %24 {strides = array<i32>} : memref<1x128xf32, #tpu.memory_space<vmem>>, vector<1x128xf32>,
    %c0_16 = arith.constant 0 : index
    %c0_17 = arith.constant 0 : index
    %26 = vector.load %arg12[%c0_16, %c0_17] : memref<4x128xf32, #tpu.memory_space<vmem>>, vector<4x128xf32>
    %27 = vector.broadcast %14 : vector<1x128xf32> to vector<4x128xf32>
    %28 = arith.mulf %27, %26 : vector<4x128xf32>
    %cst_18 = arith.constant dense<0.000000e+00> : vector<4x128xf32>
    %29 = tpu.matmul %6, %18, %cst_18 {dimension_numbers = #tpu.dot_dimension_numbers<[1], [0], [0], [1], [0, 0, 1, 1], [], []>} : vector<4x128xbf16>, vector<128x128xbf16>, vector<4x128xf32> -> vector<4x128xf32>
    %30 = arith.addf %28, %29 : vector<4x128xf32>
    %c0_19 = arith.constant 0 : index
    %c0_20 = arith.constant 0 : index
    %31 = vector.load %arg12[%c0_19, %c0_20] : memref<4x128xf32, #tpu.memory_space<vmem>>, vector<4x128xf32>
    tpu.vector_store %arg12[%c0_19, %c0_20], %30 {strides = array<i32>} : memref<4x128xf32, #tpu.memory_space<vmem>>, vector<4x128xf32>,
    %c0_21 = arith.constant 0 : index
    %c0_22 = arith.constant 0 : index
    %32 = vector.load %arg10[%c0_21, %c0_22] : memref<1x128xf32, #tpu.memory_space<vmem>>, vector<1x128xf32>
    tpu.vector_store %arg10[%c0_21, %c0_22], %12 {strides = array<i32>} : memref<1x128xf32, #tpu.memory_space<vmem>>, vector<1x128xf32>,
    %c1_i32 = arith.constant 1 : i32
    %33 = arith.cmpi eq, %arg2, %c1_i32 : i32
    %34 = arith.extui %33 : i1 to i32
    %c0_i32_23 = arith.constant 0 : i32
    %35 = arith.cmpi ne, %34, %c0_i32_23 : i32
    scf.if %35 {
      %c0_24 = arith.constant 0 : index
      %c0_25 = arith.constant 0 : index
      %36 = vector.load %arg11[%c0_24, %c0_25] : memref<1x128xf32, #tpu.memory_space<vmem>>, vector<1x128xf32>
      %37 = tpu.reciprocal %36 : vector<1x128xf32> -> vector<1x128xf32>
      %c0_26 = arith.constant 0 : index
      %c0_27 = arith.constant 0 : index
      %c0_28 = arith.constant 0 : index
      %38 = vector.load %arg3[%c0_26, %c0_27, %c0_28] : memref<1x4x128xf32, #tpu.memory_space<vmem>>, vector<1x4x128xf32>
      %39 = vector.shape_cast %38 : vector<1x4x128xf32> to vector<4x128xf32>
      %c0_29 = arith.constant 0 : index
      %c0_30 = arith.constant 0 : index
      %40 = vector.load %arg12[%c0_29, %c0_30] : memref<4x128xf32, #tpu.memory_space<vmem>>, vector<4x128xf32>
      %41 = vector.broadcast %37 : vector<1x128xf32> to vector<4x128xf32>
      %42 = arith.mulf %40, %41 : vector<4x128xf32>
      %43 = arith.addf %39, %42 : vector<4x128xf32>
      %c0_31 = arith.constant 0 : index
      %c0_32 = arith.constant 0 : index
      %c0_33 = arith.constant 0 : index
      %44 = vector.load %arg8[%c0_31, %c0_32, %c0_33] : memref<1x4x128xf32, #tpu.memory_space<vmem>>, vector<1x4x128xf32>
      %45 = vector.shape_cast %44 : vector<1x4x128xf32> to vector<4x128xf32>
      %46 = vector.shape_cast %43 : vector<4x128xf32> to vector<1x4x128xf32>
      tpu.vector_store %arg8[%c0_31, %c0_32, %c0_33], %46 {strides = array<i32>} : memref<1x4x128xf32, #tpu.memory_space<vmem>>, vector<1x4x128xf32>,
    } else {
    }
    return
  }
  func.func @transform_0(%arg0: i32, %arg1: i32, %arg2: i32) -> (i32, i32, i32) {
    %c0_i32 = arith.constant 0 : i32
    %c0_i32_0 = arith.constant 0 : i32
    return %arg0, %c0_i32, %arg1 : i32, i32, i32
  }
  func.func @transform_1(%arg0: i32, %arg1: i32, %arg2: i32) -> (i32, i32, i32) {
    %c0_i32 = arith.constant 0 : i32
    %c0_i32_0 = arith.constant 0 : i32
    return %arg0, %c0_i32, %arg2 : i32, i32, i32
  }
  func.func @transform_2(%arg0: i32, %arg1: i32, %arg2: i32) -> (i32, i32, i32) {
    %c0_i32 = arith.constant 0 : i32
    %c0_i32_0 = arith.constant 0 : i32
    return %arg0, %c0_i32, %arg2 : i32, i32, i32
  }
  func.func @transform_3(%arg0: i32, %arg1: i32, %arg2: i32) -> (i32, i32) {
    %c0_i32 = arith.constant 0 : i32
    %c0_i32_0 = arith.constant 0 : i32
    %c0_i32_1 = arith.constant 0 : i32
    return %c0_i32, %c0_i32_0 : i32, i32
  }
  func.func @transform_4(%arg0: i32, %arg1: i32, %arg2: i32) -> (i32, i32) {
    %c0_i32 = arith.constant 0 : i32
    %c0_i32_0 = arith.constant 0 : i32
    %c0_i32_1 = arith.constant 0 : i32
    return %c0_i32, %c0_i32_0 : i32, i32
  }
  func.func @transform_5(%arg0: i32, %arg1: i32, %arg2: i32) -> (i32, i32, i32) {
    %c0_i32 = arith.constant 0 : i32
    %c0_i32_0 = arith.constant 0 : i32
    return %arg0, %c0_i32, %arg1 : i32, i32, i32
  }
}

</mosaic_0001>

<llo_original>
// kernel: nonlocal2d_pallas.1
$region0: #{nonlocal2d_pallas.1}
  #allocation0 [shape = 'u32[]', space=smem, size = 0x4, offset = 0x4, fixed_abs, tag = 'smem constant byte address 0x4 - core index']
  #allocation1 [shape = 'u32[144,128]{1,0:T(1,128)}', space=vmem, size = 0x12000, scoped, tag = 'internal scratch']
  #allocation2 [shape = 'bf16[32,128]{1,0:T(16,128)(2,1)}', space=vmem, size = 0x2000, scoped, tag = 'scratch operand']
  #allocation3 [shape = 'f32[1,128]{1,0:T(1,128)}', space=vmem, size = 0x200, scoped, tag = 'scratch operand']
  #allocation4 [shape = 'f32[1,128]{1,0:T(1,128)}', space=vmem, size = 0x200, scoped, tag = 'scratch operand']
  #allocation5 [shape = 'f32[4,128]{1,0:T(4,128)}', space=vmem, size = 0x800, scoped, tag = 'scratch operand']
  %s0 = inlined_call_operand.vmem [shape: f32[2,4,256], index: 0, kind: input, shape index: {}]
  %s1 = inlined_call_operand.vmem [shape: bf16[2,32,256], index: 1, kind: input, shape index: {}]
  %s2 = inlined_call_operand.vmem [shape: bf16[2,4,256], index: 2, kind: input, shape index: {}]
  %s3 = inlined_call_operand.vmem [shape: bf16[32,4], index: 3, kind: input, shape index: {}]
  %s4 = inlined_call_operand.vmem [shape: f32[32,1], index: 4, kind: input, shape index: {}]
  %s5 = inlined_call_operand.vmem [shape: f32[2,4,256], index: 5, kind: output, shape index: {}]
  %s6 = sld [smem:[#allocation0]]
  $region102: #{nonlocal2d_pallas.1} parent=0
    _
  %s8 = ssub.s32 1, %s6
  %s9 = scalar_select 0, %s8, %s6
  $region1: #{nonlocal2d_pallas.1} parent=0
    #allocation6 [shape = 'u8[16384]{0}', space=vmem, size = 0x4000, scoped, tag = 'input window, operand 1']
    loop: start=0, step=1, limit=10
    $region2: #{nonlocal2d_pallas.1} parent=1 // loop_pre_header
      _
    $region3: #{nonlocal2d_pallas.1} parent=1 // loop_header
      %s11 = sphi 0, %s15
      %p12 = scmp.ge.s32.totalorder %s11, 10
      %s18 = sphi 0, %s37
      %s19 = sphi 0, %s33
      %s20 = sphi 0, %s29
      %s21 = sphi 0, %s18
      %s22 = sphi 0, %s19
      %s23 = sphi 0, %s20
      %s24 = sphi 0, %s21
      %s25 = sphi 0, %s22
      %s26 = sphi 0, %s23
      %s42 = sphi 0, %s44
      %s45 = sphi 0, %s42
      %s46 = sphi 0, %s45
      %s62 = sphi 0, %s46
      %s70 = sphi 0, %s72
      %s73 = sphi 0, %s70
      %s74 = sphi 0, %s73
      %s90 = sphi 0, %s74
      %s98 = sphi 0, %s100
      %s101 = sphi 0, %s98
      %s102 = sphi 0, %s101
      %s118 = sphi 0, %s102
      %s122 = sphi 0, %s122
      %s124 = sphi 0, %s122
      %s125 = sphi 0, %s124
      %s139 = sphi 0, %s125
      %s143 = sphi 0, %s143
      %s145 = sphi 0, %s143
      %s146 = sphi 0, %s145
      %s160 = sphi 0, %s146
      %s168 = sphi 0, %s170
      %s171 = sphi 0, %s168
      %s172 = sphi 0, %s171
      %s188 = sphi 0, %s172
    $region4: #{nonlocal2d_pallas.1} parent=1 // loop_header_branch
      %14 = sbr.rel (%p12) target = $region8
    $region5: #{nonlocal2d_pallas.1} parent=1 // loop_body
      %s16 = ssub.s32 %s11, 1
      %s17 = ssub.s32 %s11, 2
      %s27 = sadd.s32 1, %s20
      %p28 = scmp.ge.s32.totalorder %s27, 2
      %s29 = scalar_select %p28, 0, %s27
      %s30 = sadd.s32 1, %s19
      %s31 = scalar_select %p28, %s30, %s19
      %p32 = scmp.ge.s32.totalorder %s31, 2
      %s33 = scalar_select %p32, 0, %s31
      %s34 = sadd.s32 1, %s18
      %s35 = scalar_select %p32, %s34, %s18
      %p36 = scmp.ge.s32.totalorder %s35, 2
      %s37 = scalar_select %p36, 0, %s35
      %s38 = ssub.s32 %s18, %s37
      %s39 = ssub.s32 %s19, %s33
      %s40 = sor.u32 %s38, %s39
      %p41 = scmp.eq.s32.totalorder %s40, 0
      %s43 = sadd.s32 %s42, 1
      %s44 = scalar_select %p41, %s42, %s43
      %p47 = pneg %p41
      %p48 = scmp.eq.s32.totalorder %s11, 7
      %p49 = por %p47, %p48
      %p50 = scmp.ne.s32.totalorder %s42, %s45
      %p51 = scmp.eq.s32.totalorder %s11, 0
      %p52 = por %p50, %p51
      %p53 = scmp.ne.s32.totalorder %s42, %s45
      %p54 = scmp.eq.s32.totalorder %s16, 7
      %p55 = por %p53, %p54
      %p56 = scmp.ne.s32.totalorder %s45, %s46
      %p57 = scmp.eq.s32.totalorder %s16, 0
      %p58 = por %p56, %p57
      %p59 = scmp.ne.s32.totalorder %s45, %s46
      %p60 = scmp.eq.s32.totalorder %s17, 7
      %p61 = por %p59, %p60
      %p63 = scmp.ne.s32.totalorder %s46, %s62
      %p64 = scmp.eq.s32.totalorder %s17, 0
      %p65 = por %p63, %p64
      %s66 = ssub.s32 %s18, %s37
      %s67 = ssub.s32 %s20, %s29
      %s68 = sor.u32 %s66, %s67
      %p69 = scmp.eq.s32.totalorder %s68, 0
      %s71 = sadd.s32 %s70, 1
      %s72 = scalar_select %p69, %s70, %s71
      %p75 = pneg %p69
      %p76 = scmp.eq.s32.totalorder %s11, 7
      %p77 = por %p75, %p76
      %p78 = scmp.ne.s32.totalorder %s70, %s73
      %p79 = scmp.eq.s32.totalorder %s11, 0
      %p80 = por %p78, %p79
      %p81 = scmp.ne.s32.totalorder %s70, %s73
      %p82 = scmp.eq.s32.totalorder %s16, 7
      %p83 = por %p81, %p82
      %p84 = scmp.ne.s32.totalorder %s73, %s74
      %p85 = scmp.eq.s32.totalorder %s16, 0
      %p86 = por %p84, %p85
      %p87 = scmp.ne.s32.totalorder %s73, %s74
      %p88 = scmp.eq.s32.totalorder %s17, 7
      %p89 = por %p87, %p88
      %p91 = scmp.ne.s32.totalorder %s74, %s90
      %p92 = scmp.eq.s32.totalorder %s17, 0
      %p93 = por %p91, %p92
      %s94 = ssub.s32 %s18, %s37
      %s95 = ssub.s32 %s20, %s29
      %s96 = sor.u32 %s94, %s95
      %p97 = scmp.eq.s32.totalorder %s96, 0
      %s99 = sadd.s32 %s98, 1
      %s100 = scalar_select %p97, %s98, %s99
      %p103 = pneg %p97
      %p104 = scmp.eq.s32.totalorder %s11, 7
      %p105 = por %p103, %p104
      %p106 = scmp.ne.s32.totalorder %s98, %s101
      %p107 = scmp.eq.s32.totalorder %s11, 0
      %p108 = por %p106, %p107
      %p109 = scmp.ne.s32.totalorder %s98, %s101
      %p110 = scmp.eq.s32.totalorder %s16, 7
      %p111 = por %p109, %p110
      %p112 = scmp.ne.s32.totalorder %s101, %s102
      %p113 = scmp.eq.s32.totalorder %s16, 0
      %p114 = por %p112, %p113
      %p115 = scmp.ne.s32.totalorder %s101, %s102
      %p116 = scmp.eq.s32.totalorder %s17, 7
      %p117 = por %p115, %p116
      %p119 = scmp.ne.s32.totalorder %s102, %s118
      %p120 = scmp.eq.s32.totalorder %s17, 0
      %p121 = por %p119, %p120
      %s123 = sadd.s32 %s122, 1
      %p126 = scmp.eq.s32.totalorder %s11, 7
      %p127 = scmp.ne.s32.totalorder %s122, %s124
      %p128 = scmp.eq.s32.totalorder %s11, 0
      %p129 = por %p127, %p128
      %p130 = scmp.ne.s32.totalorder %s122, %s124
      %p131 = scmp.eq.s32.totalorder %s16, 7
      %p132 = por %p130, %p131
      %p133 = scmp.ne.s32.totalorder %s124, %s125
      %p134 = scmp.eq.s32.totalorder %s16, 0
      %p135 = por %p133, %p134
      %p136 = scmp.ne.s32.totalorder %s124, %s125
      %p137 = scmp.eq.s32.totalorder %s17, 7
      %p138 = por %p136, %p137
      %p140 = scmp.ne.s32.totalorder %s125, %s139
      %p141 = scmp.eq.s32.totalorder %s17, 0
      %p142 = por %p140, %p141
      %s144 = sadd.s32 %s143, 1
      %p147 = scmp.eq.s32.totalorder %s11, 7
      %p148 = scmp.ne.s32.totalorder %s143, %s145
      %p149 = scmp.eq.s32.totalorder %s11, 0
      %p150 = por %p148, %p149
      %p151 = scmp.ne.s32.totalorder %s143, %s145
      %p152 = scmp.eq.s32.totalorder %s16, 7
      %p153 = por %p151, %p152
      %p154 = scmp.ne.s32.totalorder %s145, %s146
      %p155 = scmp.eq.s32.totalorder %s16, 0
      %p156 = por %p154, %p155
      %p157 = scmp.ne.s32.totalorder %s145, %s146
      %p158 = scmp.eq.s32.totalorder %s17, 7
      %p159 = por %p157, %p158
      %p161 = scmp.ne.s32.totalorder %s146, %s160
      %p162 = scmp.eq.s32.totalorder %s17, 0
      %p163 = por %p161, %p162
      %s164 = ssub.s32 %s18, %s37
      %s165 = ssub.s32 %s19, %s33
      %s166 = sor.u32 %s164, %s165
      %p167 = scmp.eq.s32.totalorder %s166, 0
      %s169 = sadd.s32 %s168, 1
      %s170 = scalar_select %p167, %s168, %s169
      %p173 = pneg %p167
      %p174 = scmp.eq.s32.totalorder %s11, 7
      %p175 = por %p173, %p174
      %p176 = scmp.ne.s32.totalorder %s168, %s171
      %p177 = scmp.eq.s32.totalorder %s11, 0
      %p178 = por %p176, %p177
      %p179 = scmp.ne.s32.totalorder %s168, %s171
      %p180 = scmp.eq.s32.totalorder %s16, 7
      %p181 = por %p179, %p180
      %p182 = scmp.ne.s32.totalorder %s171, %s172
      %p183 = scmp.eq.s32.totalorder %s16, 0
      %p184 = por %p182, %p183
      %p185 = scmp.ne.s32.totalorder %s171, %s172
      %p186 = scmp.eq.s32.totalorder %s17, 7
      %p187 = por %p185, %p186
      %p189 = scmp.ne.s32.totalorder %s172, %s188
      %p190 = scmp.eq.s32.totalorder %s17, 0
      %p191 = por %p189, %p190
      %p192 = scmp.le.s32.totalorder 1, %s11
      %p193 = scmp.lt.s32.totalorder %s11, 9
      %p194 = pnand %p192, %p193
      %p195 = pneg %p194
      // Predicated region
      $region9: #{nonlocal2d_pallas.1} parent=5 // pred_check
        _
      $region10: #{nonlocal2d_pallas.1} parent=5 // pred_check_branch
        %197 = sbr.rel (%p194) target = $region12
      $region11: #{nonlocal2d_pallas.1} parent=5 // pred_region
        %s198 = ssub.s32 %s11, 1
        // Predicated region
        $region13: #{nonlocal2d_pallas.1} parent=11 // pred_check
          %p199 = pneg %p135
        $region14: #{nonlocal2d_pallas.1} parent=11 // pred_check_branch
          %201 = sbr.rel (%p199) target = $region16
        $region15: #{nonlocal2d_pallas.1} parent=11 // pred_region
          _
        $region16: #{nonlocal2d_pallas.1} parent=11 // pred_fallthru
          _
        // Predicated region
        $region17: #{nonlocal2d_pallas.1} parent=11 // pred_check
          %p202 = pneg %p156
        $region18: #{nonlocal2d_pallas.1} parent=11 // pred_check_branch
          %204 = sbr.rel (%p202) target = $region20
        $region19: #{nonlocal2d_pallas.1} parent=11 // pred_region
          _
        $region20: #{nonlocal2d_pallas.1} parent=11 // pred_fallthru
          _
      $region12: #{nonlocal2d_pallas.1} parent=5 // pred_fallthru
        _
      %p205 = scmp.lt.s32.totalorder %s11, 8
      // Predicated region
      $region21: #{nonlocal2d_pallas.1} parent=5 // pred_check
        %p206 = pneg %p205
      $region22: #{nonlocal2d_pallas.1} parent=5 // pred_check_branch
        %208 = sbr.rel (%p206) target = $region24
      $region23: #{nonlocal2d_pallas.1} parent=5 // pred_region
        // Predicated region
        $region25: #{nonlocal2d_pallas.1} parent=23 // pred_check
          %p209 = pneg %p52
        $region26: #{nonlocal2d_pallas.1} parent=23 // pred_check_branch
          %211 = sbr.rel (%p209) target = $region28
        $region27: #{nonlocal2d_pallas.1} parent=23 // pred_region
          %p212 = scmp.lt.s32.totalorder %s18, 1
          %s213 = scalar_select %p212, %s18, 1
          %p214 = scmp.lt.s32.totalorder %s19, 1
          %s215 = scalar_select %p214, %s19, 1
          %s216 = smul.addr %s213, 2
          %s217 = sadd.s32 %s215, %s216
          %s218 = smul.addr %s217, 4
          %s219 = scalar_lea.vmem %s0, %s218
        $region28: #{nonlocal2d_pallas.1} parent=23 // pred_fallthru
          _
        // Predicated region
        $region29: #{nonlocal2d_pallas.1} parent=23 // pred_check
          %p220 = pneg %p80
        $region30: #{nonlocal2d_pallas.1} parent=23 // pred_check_branch
          %222 = sbr.rel (%p220) target = $region32
        $region31: #{nonlocal2d_pallas.1} parent=23 // pred_region
          %s223 = sand.u32 %s70, 1
          %s224 = sand.u32 %s70, 1
          %s225 = smul.addr %s224, 16
          %s226 = scalar_lea.vmem [#allocation6], %s225
          %s227 = smul.addr %s18, 8
          %s228 = sadd.s32 %s20, %s227
          %s229 = smul.addr %s228, 4
          %s230 = scalar_lea.vmem %s1, %s229
          // Predicated region
          $region33: #{nonlocal2d_pallas.1} parent=31 // pred_check
            _
          $region34: #{nonlocal2d_pallas.1} parent=31 // pred_check_branch
            %232 = sbr.rel (0) target = $region36
          $region35: #{nonlocal2d_pallas.1} parent=31 // pred_region
            // Predicated region
            $region37: #{nonlocal2d_pallas.1} parent=35 // pred_check
              _
            $region38: #{nonlocal2d_pallas.1} parent=35 // pred_check_branch
              %234 = sbr.rel target = $region40
            $region39: #{nonlocal2d_pallas.1} parent=35 // pred_region
              // Predicated region
              $region52: #{nonlocal2d_pallas.1} parent=39 // pred_check
                _
              $region53: #{nonlocal2d_pallas.1} parent=39 // pred_check_branch
                %255 = sbr.rel (0) target = $region55
              $region54: #{nonlocal2d_pallas.1} parent=39 // pred_region
                loop: start=0, step=1, limit=1
                $region56: #{nonlocal2d_pallas.1} parent=54 // loop_pre_header
                  _
                $region57: #{nonlocal2d_pallas.1} parent=54 // loop_header
                  %s257 = sphi 0, %s261
                  %p258 = scmp.ge.s32.totalorder %s257, 1
                  %s262 = sphi %s230, %s230
                  %s263 = sphi %s226, %s226
                $region58: #{nonlocal2d_pallas.1} parent=54 // loop_header_branch
                  %260 = sbr.rel (%p258) target = $region62
                $region59: #{nonlocal2d_pallas.1} parent=54 // loop_body
                  _
                $region60: #{nonlocal2d_pallas.1} parent=54 // loop_footer
                  %s261 = sadd.s32 1, %s257
                $region61: #{nonlocal2d_pallas.1} parent=54 // loop_footer_branch
                  %256 = sbr.rel target = $region57
                $region62: #{nonlocal2d_pallas.1} parent=54 // loop_exit
                  _
                loop: start=0, step=1, limit=1
                $region63: #{nonlocal2d_pallas.1} parent=54 // loop_pre_header
                  _
                $region64: #{nonlocal2d_pallas.1} parent=54 // loop_header
                  %s266 = sphi 0, %s270
                  %p267 = scmp.ge.s32.totalorder %s266, 1
                  %s271 = sphi %s230, %s230
                  %s272 = sphi %s226, %s226
                $region65: #{nonlocal2d_pallas.1} parent=54 // loop_header_branch
                  %269 = sbr.rel (%p267) target = $region69
                $region66: #{nonlocal2d_pallas.1} parent=54 // loop_body
                  %v273 = vld [vmem:[%s271] sm:$0xf]
                  %274 = vst [vmem:[%s272] sm:$0xf] %v273
                  %v275 = vld [vmem:[%s271 + $0x8] sm:$0xf]
                  %276 = vst [vmem:[%s272 + $0x4] sm:$0xf] %v275
                  %v277 = vld [vmem:[%s271 + $0x10] sm:$0xf]
                  %278 = vst [vmem:[%s272 + $0x8] sm:$0xf] %v277
                  %v279 = vld [vmem:[%s271 + $0x18] sm:$0xf]
                  %280 = vst [vmem:[%s272 + $0xc] sm:$0xf] %v279
                $region67: #{nonlocal2d_pallas.1} parent=54 // loop_footer
                  %s270 = sadd.s32 1, %s266
                $region68: #{nonlocal2d_pallas.1} parent=54 // loop_footer_branch
                  %265 = sbr.rel target = $region64
                $region69: #{nonlocal2d_pallas.1} parent=54 // loop_exit
                  _
              $region55: #{nonlocal2d_pallas.1} parent=39 // pred_fallthru
                _
            $region40: #{nonlocal2d_pallas.1} parent=35 // pred_fallthru
              _
            // Predicated region
            $region41: #{nonlocal2d_pallas.1} parent=35 // pred_check
              _
            $region42: #{nonlocal2d_pallas.1} parent=35 // pred_check_branch
              %236 = sbr.rel (0) target = $region44
            $region43: #{nonlocal2d_pallas.1} parent=35 // pred_region
              loop: start=0, step=1, limit=1
              $region45: #{nonlocal2d_pallas.1} parent=43 // loop_pre_header
                _
              $region46: #{nonlocal2d_pallas.1} parent=43 // loop_header
                %s239 = sphi 0, %s243
                %p240 = scmp.ge.s32.totalorder %s239, 1
                %s244 = sphi %s230, %s230
                %s245 = sphi %s226, %s226
              $region47: #{nonlocal2d_pallas.1} parent=43 // loop_header_branch
                %242 = sbr.rel (%p240) target = $region51
              $region48: #{nonlocal2d_pallas.1} parent=43 // loop_body
                %v246 = vld [vmem:[%s244] sm:$0xf]
                %247 = vst [vmem:[%s245] sm:$0xf] %v246
                %v248 = vld [vmem:[%s244 + $0x8] sm:$0xf]
                %249 = vst [vmem:[%s245 + $0x4] sm:$0xf] %v248
                %v250 = vld [vmem:[%s244 + $0x10] sm:$0xf]
                %251 = vst [vmem:[%s245 + $0x8] sm:$0xf] %v250
                %v252 = vld [vmem:[%s244 + $0x18] sm:$0xf]
                %253 = vst [vmem:[%s245 + $0xc] sm:$0xf] %v252
              $region49: #{nonlocal2d_pallas.1} parent=43 // loop_footer
                %s243 = sadd.s32 1, %s239
              $region50: #{nonlocal2d_pallas.1} parent=43 // loop_footer_branch
                %238 = sbr.rel target = $region46
              $region51: #{nonlocal2d_pallas.1} parent=43 // loop_exit
                _
            $region44: #{nonlocal2d_pallas.1} parent=35 // pred_fallthru
              _
          $region36: #{nonlocal2d_pallas.1} parent=31 // pred_fallthru
            _
          %281 = vnop
        $region32: #{nonlocal2d_pallas.1} parent=23 // pred_fallthru
          _
        // Predicated region
        $region70: #{nonlocal2d_pallas.1} parent=23 // pred_check
          %p282 = pneg %p108
        $region71: #{nonlocal2d_pallas.1} parent=23 // pred_check_branch
          %284 = sbr.rel (%p282) target = $region73
        $region72: #{nonlocal2d_pallas.1} parent=23 // pred_region
          %p285 = scmp.lt.s32.totalorder %s18, 1
          %s286 = scalar_select %p285, %s18, 1
          %p287 = scmp.lt.s32.totalorder %s20, 1
          %s288 = scalar_select %p287, %s20, 1
          %s289 = smul.addr %s286, 2
          %s290 = sadd.s32 %s288, %s289
          %s291 = smul.addr %s290, 2
          %s292 = scalar_lea.vmem %s2, %s291
        $region73: #{nonlocal2d_pallas.1} parent=23 // pred_fallthru
          _
      $region24: #{nonlocal2d_pallas.1} parent=5 // pred_fallthru
        _
      %p293 = scmp.le.s32.totalorder 1, %s11
      %p294 = scmp.lt.s32.totalorder %s11, 9
      %p295 = pnand %p293, %p294
      %p296 = pneg %p295
      // Predicated region
      $region74: #{nonlocal2d_pallas.1} parent=5 // pred_check
        _
      $region75: #{nonlocal2d_pallas.1} parent=5 // pred_check_branch
        %298 = sbr.rel (%p295) target = $region77
      $region76: #{nonlocal2d_pallas.1} parent=5 // pred_region
        %s299 = ssub.s32 %s11, 1
        %s300 = sand.u32 %s73, 1
        %s301 = sand.u32 %s73, 1
        %s302 = smul.addr %s301, 16
        %s303 = scalar_lea.vmem [#allocation6], %s302
        // Predicated region
        $region78: #{nonlocal2d_pallas.1} parent=76 // pred_check
          %p304 = pneg %p86
        $region79: #{nonlocal2d_pallas.1} parent=76 // pred_check_branch
          %306 = sbr.rel (%p304) target = $region81
        $region80: #{nonlocal2d_pallas.1} parent=76 // pred_region
          _
        $region81: #{nonlocal2d_pallas.1} parent=76 // pred_fallthru
          _
        %p307 = scmp.lt.s32.totalorder %s21, 1
        %s308 = scalar_select %p307, %s21, 1
        %p309 = scmp.lt.s32.totalorder %s22, 1
        %s310 = scalar_select %p309, %s22, 1
        %s311 = smul.addr %s308, 2
        %s312 = sadd.s32 %s310, %s311
        %s313 = smul.addr %s312, 4
        %s314 = scalar_lea.vmem %s0, %s313
        %p315 = pneg %p58
        %p316 = pneg %p55
        %s317 = sand.u32 %s73, 1
        %s318 = sand.u32 %s73, 1
        %s319 = smul.addr %s318, 16
        %s320 = scalar_lea.vmem [#allocation6], %s319
        %p321 = pneg %p86
        %p322 = pneg %p83
        %p323 = scmp.lt.s32.totalorder %s21, 1
        %s324 = scalar_select %p323, %s21, 1
        %p325 = scmp.lt.s32.totalorder %s23, 1
        %s326 = scalar_select %p325, %s23, 1
        %s327 = smul.addr %s324, 2
        %s328 = sadd.s32 %s326, %s327
        %s329 = smul.addr %s328, 2
        %s330 = scalar_lea.vmem %s2, %s329
        %p331 = pneg %p114
        %p332 = pneg %p111
        %p333 = pneg %p135
        %p334 = pneg %p132
        %p335 = pneg %p156
        %p336 = pneg %p153
        %p337 = pneg %p184
        %p338 = pneg %p181
        %p339 = scmp.lt.s32.totalorder %s21, 1
        %s340 = scalar_select %p339, %s21, 1
        %p341 = scmp.lt.s32.totalorder %s22, 1
        %s342 = scalar_select %p341, %s22, 1
        %s343 = smul.addr %s340, 2
        %s344 = sadd.s32 %s342, %s343
        %s345 = smul.addr %s344, 4
        %s346 = scalar_lea.vmem %s5, %s345
        %p347 = scmp.lt.s32.totalorder %s21, 1
        %s348 = scalar_select %p347, %s21, 1
        %p349 = scmp.lt.s32.totalorder %s22, 1
        %s350 = scalar_select %p349, %s22, 1
        %s351 = smul.addr %s348, 2
        %s352 = sadd.s32 %s350, %s351
        %s353 = smul.addr %s352, 4
        %s354 = scalar_lea.vmem %s0, %s353
        %p355 = scmp.lt.s32.totalorder %s21, 1
        %s356 = scalar_select %p355, %s21, 1
        %p357 = scmp.lt.s32.totalorder %s23, 1
        %s358 = scalar_select %p357, %s23, 1
        %s359 = smul.addr %s356, 2
        %s360 = sadd.s32 %s358, %s359
        %s361 = smul.addr %s360, 2
        %s362 = scalar_lea.vmem %s2, %s361
        %p363 = scmp.lt.s32.totalorder %s21, 1
        %s364 = scalar_select %p363, %s21, 1
        %p365 = scmp.lt.s32.totalorder %s22, 1
        %s366 = scalar_select %p365, %s22, 1
        %s367 = smul.addr %s364, 2
        %s368 = sadd.s32 %s366, %s367
        %s369 = smul.addr %s368, 4
        %s370 = scalar_lea.vmem %s5, %s369
        %p372 = scmp.eq.s32.totalorder %s23, 0
        // Predicated region
        $region82: #{nonlocal2d_pallas.1} parent=76 // pred_check
          %p373 = pneg %p372
        $region83: #{nonlocal2d_pallas.1} parent=76 // pred_check_branch
          %375 = sbr.rel (%p373) target = $region85
        $region84: #{nonlocal2d_pallas.1} parent=76 // pred_region
          %v376 = vld [vmem:[%s354] sm:$0xf]
          %v377 = vld [vmem:[%s3] sm:$0xf]
          %v378 = vld [vmem:[%s3 + $0x4] sm:$0xf]
          %v379 = vld [vmem:[%s3 + $0x8] sm:$0xf]
          %v380 = vld [vmem:[%s3 + $0xc] sm:$0xf]
          %v381 = vpack.c.bf16 %v376, %v376
          %v382 = vld [vmem:[%s4] sm:$0xff]
          %v383 = vld [vmem:[%s4 + $0x8] sm:$0xff]
          %v384 = vld [vmem:[%s4 + $0x10] sm:$0xff]
          %v385 = vld [vmem:[%s4 + $0x18] sm:$0xff]
          %387 = vset.pattern.permute.xlu0 0
          %388 = vperm.xlu0 %387, %v382
          %v389 = vpop.permute.xlu0 %388
          %392 = vset.pattern.permute.xlu0 0
          %393 = vperm.xlu0 %392, %v383
          %v394 = vpop.permute.xlu0 %393
          %397 = vset.pattern.permute.xlu0 0
          %398 = vperm.xlu0 %397, %v384
          %v399 = vpop.permute.xlu0 %398
          %402 = vset.pattern.permute.xlu0 0
          %403 = vperm.xlu0 %402, %v385
          %v404 = vpop.permute.xlu0 %403
          %v410 = vunpack.c.l.b16 %v377
          %v411 = vunpack.c.l.b16 %v378
          %v412 = vunpack.c.l.b16 %v379
          %v413 = vunpack.c.l.b16 %v380
          %v414 = vpack.c.b16 %v411, %v410
          %v415 = vpack.c.b16 %v413, %v412
          %vm416 = vcmask 31744
          %v418 = vsel %vm416, %v414, 0
          %v421 = vsel %vm416, %v415, 0
          %vm423 = vcmask 1041408
          %v425 = vsel %vm423, %v381, 0
          %427 = vmatprep.subr.bf16.mxu0 0
          %428 = vmatpush1.bf16.msra.mxu0 %v425
          %429 = vmatprep.subr.bf16.mxu0 0
          %430 = vmatpush1.bf16.msra.mxu0 0
          %431 = vmatprep.subr.bf16.mxu0 0
          %432 = vmatpush1.bf16.msra.mxu0 0
          %433 = vmatprep.subr.bf16.mxu0 0
          %434 = vmatpush1.bf16.msra.mxu0 0
          %435 = vmatprep.subr.bf16.mxu0 0
          %436 = vmatpush1.bf16.msra.mxu0 0
          %437 = vmatprep.subr.bf16.mxu0 0
          %438 = vmatpush1.bf16.msra.mxu0 0
          %439 = vmatprep.subr.bf16.mxu0 0
          %440 = vmatpush1.bf16.msra.mxu0 0
          %441 = vmatprep.subr.bf16.mxu0 0
          %442 = vmatpush1.bf16.msra.mxu0 0
          %443 = vmatprep.subr.bf16.mxu0 0
          %444 = vmatpush1.bf16.msra.mxu0 0
          %445 = vmatprep.subr.bf16.mxu0 0
          %446 = vmatpush1.bf16.msra.mxu0 0
          %447 = vmatprep.subr.bf16.mxu0 0
          %448 = vmatpush1.bf16.msra.mxu0 0
          %449 = vmatprep.subr.bf16.mxu0 0
          %450 = vmatpush1.bf16.msra.mxu0 0
          %451 = vmatprep.subr.bf16.mxu0 0
          %452 = vmatpush1.bf16.msra.mxu0 0
          %453 = vmatprep.subr.bf16.mxu0 0
          %454 = vmatpush1.bf16.msra.mxu0 0
          %455 = vmatprep.subr.bf16.mxu0 0
          %456 = vmatpush1.bf16.msra.mxu0 0
          %457 = vmatprep.subr.bf16.mxu0 0
          %458 = vmatpush1.bf16.msra.mxu0 0
          %459 = vmatprep.mubr.bf16.mxu0 0
          %460 = vmatmul.mubr.bf16.gmra.mrb[0].mxu0 %v418
          %v461 = vpop.f32.mrb[0].mxu0
          %v462 = vadd.f32 %v389, %v461
          %v463 = vpop.f32.mrb[0].mxu0
          %v464 = vpop.f32.mrb[0].mxu0
          %v465 = vadd.f32 %v394, %v464
          %v466 = vpop.f32.mrb[0].mxu0
          %467 = vmatprep.mubr.bf16.mxu0 0
          %468 = vmatmul.mubr.bf16.gmra.mrb[0].mxu0 %v421
          %v469 = vpop.f32.mrb[0].mxu0
          %v470 = vadd.f32 %v399, %v469
          %v471 = vpop.f32.mrb[0].mxu0
          %v472 = vpop.f32.mrb[0].mxu0
          %v473 = vadd.f32 %v404, %v472
          %v474 = vpop.f32.mrb[0].mxu0
          %475 = vdwg.mxu0
          %v476 = vpack.c.bf16 %v465, %v462
          %v477 = vpack.c.bf16 %v473, %v470
          %478 = vst [vmem:[#allocation2] sm:$0xff] %v476
          %479 = vst [vmem:[#allocation2 + $0x8] sm:$0xff] %v477
          %480 = vst [vmem:[#allocation3] sm:$0x1] -inf
          %481 = vst [vmem:[#allocation4] sm:$0x1] 0.0
          %482 = vst [vmem:[#allocation5] sm:$0xf] 0.0
        $region85: #{nonlocal2d_pallas.1} parent=76 // pred_fallthru
          _
        %v483 = vld [vmem:[%s303] sm:$0xf]
        %v484 = vld [vmem:[%s303 + $0x4] sm:$0xf]
        %v485 = vld [vmem:[%s303 + $0x8] sm:$0xf]
        %v486 = vld [vmem:[%s303 + $0xc] sm:$0xf]
        %v487 = vld [vmem:[%s362] sm:$0x3]
        %v488 = vld [vmem:[#allocation2] sm:$0xff]
        %v489 = vld [vmem:[#allocation2 + $0x8] sm:$0xff]
        %v494 = vunpack.c.l.b16 %v483
        %v495 = vunpack.c.l.b16 %v484
        %v496 = vunpack.c.l.b16 %v485
        %v497 = vunpack.c.l.b16 %v486
        %v498 = vpack.c.b16 %v495, %v494
        %v499 = vpack.c.b16 %v497, %v496
        %502 = vxpose.xlu0.c.b16.start [1/8] %v498, 128
        %503 = vxpose.xlu0.c.b16.cont [2/8] %v499, 128
        %504 = vxpose.xlu0.c.b16.cont [3/8] 0, 128
        %505 = vxpose.xlu0.c.b16.cont [4/8] 0, 128
        %506 = vxpose.xlu0.c.b16.cont [5/8] 0, 128
        %507 = vxpose.xlu0.c.b16.cont [6/8] 0, 128
        %508 = vxpose.xlu0.c.b16.cont [7/8] 0, 128
        %509 = vxpose.xlu0.c.b16.end [8/8] 0, 128
        %v510 = vpop.trf.xlu0
        %v511 = vpop.trf.xlu0
        %v512 = vpop.trf.xlu0
        %v513 = vpop.trf.xlu0
        %v514 = vpop.trf.xlu0
        %v515 = vpop.trf.xlu0
        %v516 = vpop.trf.xlu0
        %v517 = vpop.trf.xlu0
        %vm518 = vcmask 261120
        %v520 = vsel %vm518, %v510, 0
        %v523 = vsel %vm518, %v511, 0
        %v526 = vsel %vm518, %v512, 0
        %v529 = vsel %vm518, %v513, 0
        %v532 = vsel %vm518, %v514, 0
        %v535 = vsel %vm518, %v515, 0
        %v538 = vsel %vm518, %v516, 0
        %v541 = vsel %vm518, %v517, 0
        %543 = vmatprep.subr.bf16.mxu0 0
        %544 = vmatpush1.bf16.msra.mxu0 %v488
        %545 = vmatprep.subr.bf16.mxu0 0
        %546 = vmatpush1.bf16.msra.mxu0 %v489
        %547 = vmatprep.subr.bf16.mxu0 0
        %548 = vmatpush1.bf16.msra.mxu0 0
        %549 = vmatprep.subr.bf16.mxu0 0
        %550 = vmatpush1.bf16.msra.mxu0 0
        %551 = vmatprep.subr.bf16.mxu0 0
        %552 = vmatpush1.bf16.msra.mxu0 0
        %553 = vmatprep.subr.bf16.mxu0 0
        %554 = vmatpush1.bf16.msra.mxu0 0
        %555 = vmatprep.subr.bf16.mxu0 0
        %556 = vmatpush1.bf16.msra.mxu0 0
        %557 = vmatprep.subr.bf16.mxu0 0
        %558 = vmatpush1.bf16.msra.mxu0 0
        %559 = vmatprep.subr.bf16.mxu0 0
        %560 = vmatpush1.bf16.msra.mxu0 0
        %561 = vmatprep.subr.bf16.mxu0 0
        %562 = vmatpush1.bf16.msra.mxu0 0
        %563 = vmatprep.subr.bf16.mxu0 0
        %564 = vmatpush1.bf16.msra.mxu0 0
        %565 = vmatprep.subr.bf16.mxu0 0
        %566 = vmatpush1.bf16.msra.mxu0 0
        %567 = vmatprep.subr.bf16.mxu0 0
        %568 = vmatpush1.bf16.msra.mxu0 0
        %569 = vmatprep.subr.bf16.mxu0 0
        %570 = vmatpush1.bf16.msra.mxu0 0
        %571 = vmatprep.subr.bf16.mxu0 0
        %572 = vmatpush1.bf16.msra.mxu0 0
        %573 = vmatprep.subr.bf16.mxu0 0
        %574 = vmatpush1.bf16.msra.mxu0 0
        %575 = vmatprep.mubr.bf16.mxu0 0
        %576 = vmatmul.mubr.bf16.gmra.mrb[0].mxu0 %v520
        %v577 = vpop.f32.mrb[0].mxu0
        %v578 = vadd.f32 0.0, %v577
        %v579 = vpop.f32.mrb[0].mxu0
        %v580 = vpop.f32.mrb[0].mxu0
        %v581 = vadd.f32 0.0, %v580
        %v582 = vpop.f32.mrb[0].mxu0
        %583 = vmatprep.mubr.bf16.mxu0 0
        %584 = vmatmul.mubr.bf16.gmra.mrb[0].mxu0 %v523
        %v585 = vpop.f32.mrb[0].mxu0
        %v586 = vadd.f32 0.0, %v585
        %v587 = vpop.f32.mrb[0].mxu0
        %v588 = vpop.f32.mrb[0].mxu0
        %v589 = vadd.f32 0.0, %v588
        %v590 = vpop.f32.mrb[0].mxu0
        %591 = vmatprep.mubr.bf16.mxu0 0
        %592 = vmatmul.mubr.bf16.gmra.mrb[0].mxu0 %v526
        %v593 = vpop.f32.mrb[0].mxu0
        %v594 = vadd.f32 0.0, %v593
        %v595 = vpop.f32.mrb[0].mxu0
        %v596 = vpop.f32.mrb[0].mxu0
        %v597 = vadd.f32 0.0, %v596
        %v598 = vpop.f32.mrb[0].mxu0
        %599 = vmatprep.mubr.bf16.mxu0 0
        %600 = vmatmul.mubr.bf16.gmra.mrb[0].mxu0 %v529
        %v601 = vpop.f32.mrb[0].mxu0
        %v602 = vadd.f32 0.0, %v601
        %v603 = vpop.f32.mrb[0].mxu0
        %v604 = vpop.f32.mrb[0].mxu0
        %v605 = vadd.f32 0.0, %v604
        %v606 = vpop.f32.mrb[0].mxu0
        %607 = vmatprep.mubr.bf16.mxu0 0
        %608 = vmatmul.mubr.bf16.gmra.mrb[0].mxu0 %v532
        %v609 = vpop.f32.mrb[0].mxu0
        %v610 = vadd.f32 0.0, %v609
        %v611 = vpop.f32.mrb[0].mxu0
        %v612 = vpop.f32.mrb[0].mxu0
        %v613 = vadd.f32 0.0, %v612
        %v614 = vpop.f32.mrb[0].mxu0
        %615 = vmatprep.mubr.bf16.mxu0 0
        %616 = vmatmul.mubr.bf16.gmra.mrb[0].mxu0 %v535
        %v617 = vpop.f32.mrb[0].mxu0
        %v618 = vadd.f32 0.0, %v617
        %v619 = vpop.f32.mrb[0].mxu0
        %v620 = vpop.f32.mrb[0].mxu0
        %v621 = vadd.f32 0.0, %v620
        %v622 = vpop.f32.mrb[0].mxu0
        %623 = vmatprep.mubr.bf16.mxu0 0
        %624 = vmatmul.mubr.bf16.gmra.mrb[0].mxu0 %v538
        %v625 = vpop.f32.mrb[0].mxu0
        %v626 = vadd.f32 0.0, %v625
        %v627 = vpop.f32.mrb[0].mxu0
        %v628 = vpop.f32.mrb[0].mxu0
        %v629 = vadd.f32 0.0, %v628
        %v630 = vpop.f32.mrb[0].mxu0
        %631 = vmatprep.mubr.bf16.mxu0 0
        %632 = vmatmul.mubr.bf16.gmra.mrb[0].mxu0 %v541
        %v633 = vpop.f32.mrb[0].mxu0
        %v634 = vadd.f32 0.0, %v633
        %v635 = vpop.f32.mrb[0].mxu0
        %v636 = vpop.f32.mrb[0].mxu0
        %v637 = vadd.f32 0.0, %v636
        %v638 = vpop.f32.mrb[0].mxu0
        %639 = vdwg.mxu0
        %v640 = vld [vmem:[#allocation3] sm:$0x1]
        %v641 = vmax.f32 %v578, %v594
        %v642 = vmax.f32 %v581, %v597
        %v643 = vmax.f32 %v586, %v602
        %v644 = vmax.f32 %v589, %v605
        %v645 = vmax.f32 %v641, %v610
        %v646 = vmax.f32 %v642, %v613
        %v647 = vmax.f32 %v643, %v618
        %v648 = vmax.f32 %v644, %v621
        %v649 = vmax.f32 %v645, %v626
        %v650 = vmax.f32 %v646, %v629
        %v651 = vmax.f32 %v647, %v634
        %v652 = vmax.f32 %v648, %v637
        %v653 = vmax.f32 %v649, %v650
        %v654 = vmax.f32 %v651, %v652
        %v655 = vmax.f32 %v653, %v654
        %v656 = vrot.slane %v655, 4
        %v657 = vmax.f32 %v655, %v656
        %v658 = vrot.slane %v657, 2
        %v659 = vmax.f32 %v657, %v658
        %v660 = vrot.slane %v659, 1
        %v661 = vmax.f32 %v659, %v660
        %v662 = vmax.f32 %v640, %v661
        %v663 = vsub.f32 %v640, %v662
        %v664 = vmul.f32 %v663, 1.442695
        %v665 = vpow.pop %v664
        %v667 = vlaneseq
        %v668 = vshrl.u32 %v667, 7
        %v669 = vsub.s32 0, %v668
        %v670 = vrot.slane %v662, %v669
        %v672 = vsub.f32 %v578, %v670
        %v673 = vsub.f32 %v581, %v670
        %v674 = vsub.f32 %v586, %v670
        %v675 = vsub.f32 %v589, %v670
        %v676 = vsub.f32 %v594, %v670
        %v677 = vsub.f32 %v597, %v670
        %v678 = vsub.f32 %v602, %v670
        %v679 = vsub.f32 %v605, %v670
        %v680 = vsub.f32 %v610, %v670
        %v681 = vsub.f32 %v613, %v670
        %v682 = vsub.f32 %v618, %v670
        %v683 = vsub.f32 %v621, %v670
        %v684 = vsub.f32 %v626, %v670
        %v685 = vsub.f32 %v629, %v670
        %v686 = vsub.f32 %v634, %v670
        %v687 = vsub.f32 %v637, %v670
        %v688 = vpack.c.bf16 %v673, %v672
        %v689 = vpack.c.bf16 %v675, %v674
        %v690 = vpack.c.bf16 %v677, %v676
        %v691 = vpack.c.bf16 %v679, %v678
        %v692 = vpack.c.bf16 %v681, %v680
        %v693 = vpack.c.bf16 %v683, %v682
        %v694 = vpack.c.bf16 %v685, %v684
        %v695 = vpack.c.bf16 %v687, %v686
        %v697 = vmul.bf16 %v688, 1069105081
        %v698 = vpow.bf16.pop %v697
        %v700 = vmul.bf16 %v689, 1069105081
        %v701 = vpow.bf16.pop %v700
        %v703 = vmul.bf16 %v690, 1069105081
        %v704 = vpow.bf16.pop %v703
        %v706 = vmul.bf16 %v691, 1069105081
        %v707 = vpow.bf16.pop %v706
        %v709 = vmul.bf16 %v692, 1069105081
        %v710 = vpow.bf16.pop %v709
        %v712 = vmul.bf16 %v693, 1069105081
        %v713 = vpow.bf16.pop %v712
        %v715 = vmul.bf16 %v694, 1069105081
        %v716 = vpow.bf16.pop %v715
        %v718 = vmul.bf16 %v695, 1069105081
        %v719 = vpow.bf16.pop %v718
        %v720 = vld [vmem:[#allocation4] sm:$0x1]
        %v721 = vmul.f32 %v665, %v720
        %v722 = vunpack.c.l.bf16 %v698
        %v723 = vunpack.c.h.bf16 %v698
        %v724 = vunpack.c.l.bf16 %v701
        %v725 = vunpack.c.h.bf16 %v701
        %v726 = vunpack.c.l.bf16 %v704
        %v727 = vunpack.c.h.bf16 %v704
        %v728 = vunpack.c.l.bf16 %v707
        %v729 = vunpack.c.h.bf16 %v707
        %v730 = vunpack.c.l.bf16 %v710
        %v731 = vunpack.c.h.bf16 %v710
        %v732 = vunpack.c.l.bf16 %v713
        %v733 = vunpack.c.h.bf16 %v713
        %v734 = vunpack.c.l.bf16 %v716
        %v735 = vunpack.c.h.bf16 %v716
        %v736 = vunpack.c.l.bf16 %v719
        %v737 = vunpack.c.h.bf16 %v719
        %v738 = vadd.f32 %v722, %v723
        %v739 = vadd.f32 %v738, %v724
        %v740 = vadd.f32 %v739, %v725
        %v741 = vadd.f32 %v740, %v726
        %v742 = vadd.f32 %v741, %v727
        %v743 = vadd.f32 %v742, %v728
        %v744 = vadd.f32 %v743, %v729
        %v745 = vadd.f32 %v744, %v730
        %v746 = vadd.f32 %v745, %v731
        %v747 = vadd.f32 %v746, %v732
        %v748 = vadd.f32 %v747, %v733
        %v749 = vadd.f32 %v748, %v734
        %v750 = vadd.f32 %v749, %v735
        %v751 = vadd.f32 %v750, %v736
        %v752 = vadd.f32 %v751, %v737
        %v753 = vrot.slane %v752, 4
        %v754 = vadd.f32 %v752, %v753
        %v755 = vrot.slane %v754, 2
        %v756 = vadd.f32 %v754, %v755
        %v757 = vrot.slane %v756, 1
        %v758 = vadd.f32 %v756, %v757
        %v759 = vadd.f32 %v721, %v758
        %760 = vst [vmem:[#allocation4] sm:$0x1] %v759
        %v761 = vld [vmem:[#allocation5] sm:$0xf]
        %v763 = vlaneseq
        %v764 = vshrl.u32 %v763, 7
        %v765 = vsub.s32 0, %v764
        %v766 = vrot.slane %v665, %v765
        %v768 = vmul.f32 %v766, %v761
        %769 = vmatprep.subr.bf16.mxu0 0
        %770 = vmatpush1.bf16.msra.mxu0 %v698
        %771 = vmatprep.subr.bf16.mxu0 0
        %772 = vmatpush1.bf16.msra.mxu0 %v701
        %773 = vmatprep.subr.bf16.mxu0 0
        %774 = vmatpush1.bf16.msra.mxu0 %v704
        %775 = vmatprep.subr.bf16.mxu0 0
        %776 = vmatpush1.bf16.msra.mxu0 %v707
        %777 = vmatprep.subr.bf16.mxu0 0
        %778 = vmatpush1.bf16.msra.mxu0 %v710
        %779 = vmatprep.subr.bf16.mxu0 0
        %780 = vmatpush1.bf16.msra.mxu0 %v713
        %781 = vmatprep.subr.bf16.mxu0 0
        %782 = vmatpush1.bf16.msra.mxu0 %v716
        %783 = vmatprep.subr.bf16.mxu0 0
        %784 = vmatpush1.bf16.msra.mxu0 %v719
        %785 = vmatprep.subr.bf16.mxu0 0
        %786 = vmatpush1.bf16.msra.mxu0 0
        %787 = vmatprep.subr.bf16.mxu0 0
        %788 = vmatpush1.bf16.msra.mxu0 0
        %789 = vmatprep.subr.bf16.mxu0 0
        %790 = vmatpush1.bf16.msra.mxu0 0
        %791 = vmatprep.subr.bf16.mxu0 0
        %792 = vmatpush1.bf16.msra.mxu0 0
        %793 = vmatprep.subr.bf16.mxu0 0
        %794 = vmatpush1.bf16.msra.mxu0 0
        %795 = vmatprep.subr.bf16.mxu0 0
        %796 = vmatpush1.bf16.msra.mxu0 0
        %797 = vmatprep.subr.bf16.mxu0 0
        %798 = vmatpush1.bf16.msra.mxu0 0
        %799 = vmatprep.subr.bf16.mxu0 0
        %800 = vmatpush1.bf16.msra.mxu0 0
        %801 = vmatprep.mubr.bf16.mxu0 0
        %802 = vmatmul.mubr.bf16.gmra.mrb[0].mxu0 %v487
        %v803 = vpop.f32.mrb[0].mxu0
        %v804 = vadd.f32 0.0, %v803
        %v805 = vpop.f32.mrb[0].mxu0
        %v806 = vpop.f32.mrb[0].mxu0
        %v807 = vpop.f32.mrb[0].mxu0
        %808 = vdwg.mxu0
        %v809 = vadd.f32 %v768, %v804
        %810 = vst [vmem:[#allocation5] sm:$0xf] %v809
        %811 = vst [vmem:[#allocation3] sm:$0x1] %v662
        %p812 = scmp.eq.s32.totalorder %s23, 1
        // Predicated region
        $region86: #{nonlocal2d_pallas.1} parent=76 // pred_check
          %p813 = pneg %p812
        $region87: #{nonlocal2d_pallas.1} parent=76 // pred_check_branch
          %815 = sbr.rel (%p813) target = $region89
        $region88: #{nonlocal2d_pallas.1} parent=76 // pred_region
          %v816 = vld [vmem:[#allocation4] sm:$0x1]
          %v817 = vrcp.pop %v816
          %v818 = vld [vmem:[%s354] sm:$0xf]
          %v819 = vld [vmem:[#allocation5] sm:$0xf]
          %v821 = vlaneseq
          %v822 = vshrl.u32 %v821, 7
          %v823 = vsub.s32 0, %v822
          %v824 = vrot.slane %v817, %v823
          %v826 = vmul.f32 %v819, %v824
          %v827 = vadd.f32 %v818, %v826
          %828 = vst [vmem:[%s370] sm:$0xf] %v827
        $region89: #{nonlocal2d_pallas.1} parent=76 // pred_fallthru
          _
        %p829 = scmp.lt.s32.totalorder %s21, 1
        %s830 = scalar_select %p829, %s21, 1
        %p831 = scmp.lt.s32.totalorder %s22, 1
        %s832 = scalar_select %p831, %s22, 1
        %s833 = smul.addr %s830, 2
        %s834 = sadd.s32 %s832, %s833
        %s835 = smul.addr %s834, 4
        %s836 = scalar_lea.vmem %s5, %s835
        // Predicated region
        $region90: #{nonlocal2d_pallas.1} parent=76 // pred_check
          %p837 = pneg %p181
        $region91: #{nonlocal2d_pallas.1} parent=76 // pred_check_branch
          %839 = sbr.rel (%p837) target = $region93
        $region92: #{nonlocal2d_pallas.1} parent=76 // pred_region
          _
        $region93: #{nonlocal2d_pallas.1} parent=76 // pred_fallthru
          _
      $region77: #{nonlocal2d_pallas.1} parent=5 // pred_fallthru
        _
      %p840 = scmp.le.s32.totalorder 2, %s11
      // Predicated region
      $region94: #{nonlocal2d_pallas.1} parent=5 // pred_check
        %p841 = pneg %p840
      $region95: #{nonlocal2d_pallas.1} parent=5 // pred_check_branch
        %843 = sbr.rel (%p841) target = $region97
      $region96: #{nonlocal2d_pallas.1} parent=5 // pred_region
        %s844 = ssub.s32 %s11, 2
        // Predicated region
        $region98: #{nonlocal2d_pallas.1} parent=96 // pred_check
          %p845 = pneg %p187
        $region99: #{nonlocal2d_pallas.1} parent=96 // pred_check_branch
          %847 = sbr.rel (%p845) target = $region101
        $region100: #{nonlocal2d_pallas.1} parent=96 // pred_region
          %p848 = scmp.lt.s32.totalorder %s24, 1
          %s849 = scalar_select %p848, %s24, 1
          %p850 = scmp.lt.s32.totalorder %s25, 1
          %s851 = scalar_select %p850, %s25, 1
          %s852 = smul.addr %s849, 2
          %s853 = sadd.s32 %s851, %s852
          %s854 = smul.addr %s853, 4
          %s855 = scalar_lea.vmem %s5, %s854
        $region101: #{nonlocal2d_pallas.1} parent=96 // pred_fallthru
          _
      $region97: #{nonlocal2d_pallas.1} parent=5 // pred_fallthru
        _
    $region6: #{nonlocal2d_pallas.1} parent=1 // loop_footer
      %s15 = sadd.s32 1, %s11
    $region7: #{nonlocal2d_pallas.1} parent=1 // loop_footer_branch
      %10 = sbr.rel target = $region3
    $region8: #{nonlocal2d_pallas.1} parent=1 // loop_exit
      _

</llo_original>
